<compile_context>
chip_gen: v7x
topology: tpu7x:2x2x1
jax: 0.10.0
libtpu: 0.0.40
codegen_flags: <defaults>
</compile_context>

<pallas_src>
import math
from functools import partial

import jax
import jax.numpy as jnp
from jax.experimental import pallas as pl
from jax.experimental.pallas import tpu as pltpu

EPS = 1e-6                 # PICA entropy epsilon
NORM_EPS = 1e-12           # F.normalize default eps (clamp on the L2 norm)
NORM_EPS_SQ = NORM_EPS * NORM_EPS


def _round_up(x, m):
    return ((x + m - 1) // m) * m


def _pica_kernel(l_ref, x1_ref, x2_ref, out_ref,
                 gram_ref, n1_ref, n2_ref, p_ref, *,
                 rep, n_or, tile_n, need_mask):
    """One (head, x1-chunk) grid step.

    x1_ref: (1, tile_n, c) block of x1 (native dtype).
    x2_ref: (1, rep, tile_n, c) block of x2 — all `rep` chunks that pair with
            this x1 chunk under the torch repeat.
    Scratch (persistent across the j1 reduction axis of each head):
      gram (c, c) f32 raw Gram; n1/n2/p (1, c) f32 column statistics.
    """
    j1 = pl.program_id(1)

    @pl.when(j1 == 0)
    def _():
        gram_ref[...] = jnp.zeros_like(gram_ref)
        n1_ref[...] = jnp.zeros_like(n1_ref)
        n2_ref[...] = jnp.zeros_like(n2_ref)
        p_ref[...] = jnp.zeros_like(p_ref)

    c = x1_ref.shape[-1]
    x1f = x1_ref[0].astype(jnp.float32)              # (tile_n, c)
    x2f = x2_ref[0].astype(jnp.float32)              # (rep, tile_n, c)

    # Pre-sum the rep chunks on the VPU (valid because x1 is repeated):
    #   gram += x1^T . (sum_r x2_r)
    x2s = jnp.sum(x2f, axis=0)                       # (tile_n, c)
    sq2 = jnp.sum(x2f * x2f, axis=0)                 # (tile_n, c)

    if need_mask:
        # cdiv grid: the last block reads past n_or; zero the invalid rows
        # (mask depends only on the row index, so it can be applied after the
        # rep-sum for the x2 quantities).
        rows_left = n_or - j1 * tile_n
        row = jax.lax.broadcasted_iota(jnp.int32, (tile_n, c), 0)
        m = row < rows_left
        x1f = jnp.where(m, x1f, 0.0)
        x2s = jnp.where(m, x2s, 0.0)
        sq2 = jnp.where(m, sq2, 0.0)

    # Single MXU matmul per grid step, f32 accumulator.
    gram_ref[...] += jax.lax.dot_general(
        x1f, x2s, (((0,), (0,)), ((), ())),
        preferred_element_type=jnp.float32)

    n1_ref[...] += jnp.sum(x1f * x1f, axis=0, keepdims=True)
    p_ref[...] += jnp.sum(x1f, axis=0, keepdims=True)
    n2_ref[...] += jnp.sum(sq2, axis=0, keepdims=True)

    @pl.when(j1 == pl.num_programs(1) - 1)
    def _():
        gram = gram_ref[...]

        # 1 / max(||col||_2, 1e-12); repeat factor folded into x1's norm.
        inv1 = jax.lax.rsqrt(jnp.maximum(n1_ref[...] * jnp.float32(rep),
                                         NORM_EPS_SQ))               # (1, c)
        inv2 = jax.lax.rsqrt(jnp.maximum(n2_ref[...], NORM_EPS_SQ))  # (1, c)

        rowi = jax.lax.broadcasted_iota(jnp.int32, (c, c), 0)
        coli = jax.lax.broadcasted_iota(jnp.int32, (c, c), 1)
        eye = rowi == coli

        # Row-scale gram by inv1 without a lane->sublane relayout:
        # diag(inv1) @ gram (tiny MXU matmul), then lane-broadcast inv2.
        d1 = jnp.where(eye, inv1, 0.0)                               # (c, c)
        pui = jnp.dot(d1, gram, preferred_element_type=jnp.float32) * inv2

        # CrossEntropy(pui, arange(c)) = mean_i[ logsumexp(pui[i]) - pui[i,i] ]
        mx = jnp.max(pui, axis=1, keepdims=True)
        lse = mx + jnp.log(jnp.sum(jnp.exp(pui - mx), axis=1, keepdims=True))
        diag = jnp.sum(jnp.where(eye, pui, 0.0), axis=1, keepdims=True)
        loss_ce = jnp.sum(lse - diag, axis=0, keepdims=True) / jnp.float32(c)

        # Negative-entropy regularizer on the cluster marginal of x1
        # (the repeat factor cancels in p / p.sum()).
        p = p_ref[...]
        p = p / jnp.sum(p, axis=1, keepdims=True)
        loss_ne = (jnp.float32(math.log(c))
                   + jnp.sum(p * jnp.log(p + EPS), axis=1, keepdims=True))

        total = loss_ce + l_ref[0, 0] * loss_ne                     # (1, 1)
        out_ref[...] = jnp.reshape(total, (1, 1, 1))


def _vmem_budgets():
    """Generation-aware (input working-set budget, vmem_limit_bytes | None)."""
    try:
        cap = int(pltpu.get_tpu_info().vmem_capacity_bytes)
    except Exception:
        cap = None
    if cap is None or cap <= 0:
        # Unknown chip: stay under the smallest scoped-VMEM default (16 MiB).
        return 10 * 1024 * 1024, None
    limit = min((cap * 3) // 4, 96 * 1024 * 1024)     # v7x: 48 MiB, v5e/v6e: 96 MiB
    budget = min((cap * 2) // 5, 48 * 1024 * 1024)    # v7x: ~25 MiB, v5e/v6e: 48 MiB
    return budget, limit


def _pick_tile_n(n_or, c, rep, itemsize, budget_bytes, *, max_rows=1024):
    """Largest row tile whose double-buffered x1 + x2 blocks fit budget_bytes,
    accounting for VMEM lane padding (c padded to 128) and sublane granularity.
    Returns (tile_n, n_blocks, need_mask)."""
    c_pad = _round_up(max(c, 1), 128)
    sub = 8 if itemsize >= 4 else (16 if itemsize == 2 else 32)
    # 2 buffers x [ x1 block (tile_n, c_pad) + x2 block (rep, tile_n, c_pad) ]
    per_row = 2 * (1 + rep) * c_pad * itemsize
    cap = max(sub, budget_bytes // per_row)
    cap = min(cap, max_rows)
    if n_or <= cap:
        return n_or, 1, False                  # one full-extent block, no masking
    tile = (cap // sub) * sub
    if tile >= 256:
        tile = (tile // 128) * 128             # keep MXU K-passes full
    tile = max(tile, sub)
    n_blocks = pl.cdiv(n_or, tile)
    return tile, n_blocks, (n_or % tile) != 0


def pica_loss(x1, x2, l=2.0, *, max_tile_rows=1024):
    """Pallas implementation of PICALoss.forward.

    Returns a (k,)-shaped array (the PyTorch module returns a list of k
    scalar losses)."""
    if x1.ndim == 2:
        x1 = x1[None]
    if x2.ndim == 2:
        x2 = x2[None]
    k, n_or, c = x1.shape
    n_tr = x2.shape[1]
    rep = n_tr // n_or
    assert rep >= 1 and rep * n_or == n_tr, "n_tr must be a multiple of n_or"
    assert x2.shape[0] == k and x2.shape[2] == c

    # Express the torch repeat through the block layout: the r-th chunk of x2
    # (rows r*n_or : (r+1)*n_or) pairs with x1 directly, so view x2 as
    # (k, rep, n_or, c) and hand each grid step all rep chunks of one x1 tile.
    x2r = jnp.reshape(x2, (k, rep, n_or, c))

    budget, vmem_limit = _vmem_budgets()
    tile_n, n1_blocks, need_mask = _pick_tile_n(
        n_or, c, rep, jnp.dtype(x1.dtype).itemsize, budget,
        max_rows=max_tile_rows)

    # Regularizer weight as an SMEM scalar (no recompile per distinct l).
    l_arr = jnp.full((1, 1), l, dtype=jnp.float32)

    cp_kwargs = dict(dimension_semantics=("parallel", "arbitrary"))
    if vmem_limit is not None:
        cp_kwargs["vmem_limit_bytes"] = int(vmem_limit)

    out = pl.pallas_call(
        partial(_pica_kernel, rep=rep, n_or=n_or, tile_n=tile_n,
                need_mask=need_mask),
        out_shape=jax.ShapeDtypeStruct((k, 1, 1), jnp.float32),
        grid_spec=pltpu.PrefetchScalarGridSpec(
            num_scalar_prefetch=0,
            grid=(k, n1_blocks),
            in_specs=[
                pl.BlockSpec(memory_space=pltpu.MemorySpace.SMEM),
                # x1: one tile per j1, resident for the whole step.
                pl.BlockSpec((1, tile_n, c), lambda kk, j1: (kk, j1, 0)),
                # x2: all rep chunks pairing with this x1 tile, in one block.
                pl.BlockSpec((1, rep, tile_n, c), lambda kk, j1: (kk, 0, j1, 0)),
            ],
            out_specs=pl.BlockSpec((1, 1, 1), lambda kk, j1: (kk, 0, 0)),
            scratch_shapes=[
                pltpu.VMEM((c, c), jnp.float32),   # raw Gram accumulator
                pltpu.VMEM((1, c), jnp.float32),   # sum x1^2 per column
                pltpu.VMEM((1, c), jnp.float32),   # sum x2^2 per column
                pltpu.VMEM((1, c), jnp.float32),   # sum x1 (cluster marginal)
            ],
        ),
        compiler_params=pltpu.CompilerParams(**cp_kwargs),
    )(l_arr, x1, x2r)
    return out[:, 0, 0]


def pica_loss_ref(x1, x2, l=2.0):
    """Pure-JAX reference matching the PyTorch forward exactly."""
    if x1.ndim == 2:
        x1 = x1[None]
    if x2.ndim == 2:
        x2 = x2[None]
    k, n_or, c = x1.shape
    n_tr = x2.shape[1]
    x1 = jnp.tile(x1, (1, n_tr // n_or, 1))

    def l2n(v):  # normalize along dim=1 (samples)
        return v / jnp.maximum(
            jnp.sqrt(jnp.sum(v * v, axis=1, keepdims=True)), NORM_EPS)

    pui = jnp.einsum('kna,knb->kab', l2n(x1), l2n(x2))
    lse = jax.scipy.special.logsumexp(pui, axis=2)
    diag = jnp.diagonal(pui, axis1=1, axis2=2)
    loss_ce = jnp.mean(lse - diag, axis=1)
    p = jnp.sum(x1, axis=1)
    p = p / jnp.sum(p, axis=1, keepdims=True)
    loss_ne = math.log(c) + jnp.sum(p * jnp.log(p + EPS), axis=1)
    return loss_ce + l * loss_ne


if __name__ == "__main__":
    key = jax.random.PRNGKey(0)
    k1, k2, k3, k4 = jax.random.split(key, 4)

    # Case 1: small shapes from the module spec (k=2 heads, n_or=8, n_tr=16, c=8).
    k, n_or, n_tr, c = 2, 8, 16, 8
    x1 = jax.nn.softmax(jax.random.normal(k1, (k, n_or, c), jnp.float32), axis=-1)
    x2 = jax.nn.softmax(jax.random.normal(k2, (k, n_tr, c), jnp.float32), axis=-1)
    out1 = jax.block_until_ready(pica_loss(x1, x2, l=2.0))
    ref1 = pica_loss_ref(x1, x2, l=2.0)
    assert out1.shape == (k,)
    assert jnp.allclose(out1, ref1, atol=1e-4, rtol=1e-4), (out1, ref1)

    # Case 2: tiled n-reduction with a ragged, masked tail
    # (n_or=52 -> 4 tiles of 16, 12 masked rows), rep=2, c=10.
    k, n_or, n_tr, c = 2, 52, 104, 10
    y1 = jax.nn.softmax(jax.random.normal(k3, (k, n_or, c), jnp.float32), axis=-1)
    y2 = jax.nn.softmax(jax.random.normal(k4, (k, n_tr, c), jnp.float32), axis=-1)
    out2 = jax.block_until_ready(pica_loss(y1, y2, l=2.0, max_tile_rows=16))
    ref2 = pica_loss_ref(y1, y2, l=2.0)
    assert jnp.allclose(out2, ref2, atol=1e-4, rtol=1e-4), (out2, ref2)

    # Case 3: bf16 inputs (kernel upcasts to f32 before any accumulation).
    x1b = x1.astype(jnp.bfloat16)
    x2b = x2.astype(jnp.bfloat16)
    out3 = jax.block_until_ready(pica_loss(x1b, x2b, l=2.0))
    ref3 = pica_loss_ref(x1b.astype(jnp.float32), x2b.astype(jnp.float32), l=2.0)
    assert jnp.allclose(out3, ref3, atol=2e-3, rtol=2e-3), (out3, ref3)

    print("KERNEL_OK")
</pallas_src>

<mosaic_0001>
module attributes {stable_mosaic.version = 11 : i64} {
  func.func @_pica_kernel(%arg0: i32, %arg1: i32, %arg2: memref<1x1xf32, #tpu.memory_space<smem>>, %arg3: memref<1x8x8xf32, #tpu.memory_space<vmem>>, %arg4: memref<1x2x8x8xf32, #tpu.memory_space<vmem>>, %arg5: memref<1x1x1xf32, #tpu.memory_space<vmem>>, %arg6: memref<8x8xf32, #tpu.memory_space<vmem>>, %arg7: memref<1x8xf32, #tpu.memory_space<vmem>>, %arg8: memref<1x8xf32, #tpu.memory_space<vmem>>, %arg9: memref<1x8xf32, #tpu.memory_space<vmem>>) attributes {dimension_semantics = [#tpu.dimension_semantics<parallel>, #tpu.dimension_semantics<arbitrary>], iteration_bounds = array<i64: 2, 1>, scalar_prefetch = 0 : i64, scratch_operands = 4 : i64, tpu.core_type = #tpu.core_type<tc>, window_params = [{transform_indices = @transform_0, window_bounds = array<i64: 1, 1>}, {transform_indices = @transform_1, window_bounds = array<i64: 1, 8, 8>}, {transform_indices = @transform_2, window_bounds = array<i64: 1, 2, 8, 8>}, {transform_indices = @transform_3, window_bounds = array<i64: 1, 1, 1>}]} {
    %c0_i32 = arith.constant 0 : i32
    %0 = arith.cmpi eq, %arg1, %c0_i32 : i32
    %1 = arith.extui %0 : i1 to i32
    %c0_i32_0 = arith.constant 0 : i32
    %2 = arith.cmpi ne, %1, %c0_i32_0 : i32
    scf.if %2 {
      %cst_30 = arith.constant 0.000000e+00 : f32
      %33 = vector.broadcast %cst_30 : f32 to vector<8x8xf32>
      %c0_31 = arith.constant 0 : index
      %c0_32 = arith.constant 0 : index
      %34 = vector.load %arg6[%c0_31, %c0_32] : memref<8x8xf32, #tpu.memory_space<vmem>>, vector<8x8xf32>
      tpu.vector_store %arg6[%c0_31, %c0_32], %33 {strides = array<i32>} : memref<8x8xf32, #tpu.memory_space<vmem>>, vector<8x8xf32>,
      %cst_33 = arith.constant 0.000000e+00 : f32
      %35 = vector.broadcast %cst_33 : f32 to vector<1x8xf32>
      %c0_34 = arith.constant 0 : index
      %c0_35 = arith.constant 0 : index
      %36 = vector.load %arg7[%c0_34, %c0_35] : memref<1x8xf32, #tpu.memory_space<vmem>>, vector<1x8xf32>
      tpu.vector_store %arg7[%c0_34, %c0_35], %35 {strides = array<i32>} : memref<1x8xf32, #tpu.memory_space<vmem>>, vector<1x8xf32>,
      %cst_36 = arith.constant 0.000000e+00 : f32
      %37 = vector.broadcast %cst_36 : f32 to vector<1x8xf32>
      %c0_37 = arith.constant 0 : index
      %c0_38 = arith.constant 0 : index
      %38 = vector.load %arg8[%c0_37, %c0_38] : memref<1x8xf32, #tpu.memory_space<vmem>>, vector<1x8xf32>
      tpu.vector_store %arg8[%c0_37, %c0_38], %37 {strides = array<i32>} : memref<1x8xf32, #tpu.memory_space<vmem>>, vector<1x8xf32>,
      %cst_39 = arith.constant 0.000000e+00 : f32
      %39 = vector.broadcast %cst_39 : f32 to vector<1x8xf32>
      %c0_40 = arith.constant 0 : index
      %c0_41 = arith.constant 0 : index
      %40 = vector.load %arg9[%c0_40, %c0_41] : memref<1x8xf32, #tpu.memory_space<vmem>>, vector<1x8xf32>
      tpu.vector_store %arg9[%c0_40, %c0_41], %39 {strides = array<i32>} : memref<1x8xf32, #tpu.memory_space<vmem>>, vector<1x8xf32>,
    } else {
    }
    %c0 = arith.constant 0 : index
    %c0_1 = arith.constant 0 : index
    %c0_2 = arith.constant 0 : index
    %3 = vector.load %arg3[%c0, %c0_1, %c0_2] : memref<1x8x8xf32, #tpu.memory_space<vmem>>, vector<1x8x8xf32>
    %4 = vector.shape_cast %3 : vector<1x8x8xf32> to vector<8x8xf32>
    %c0_3 = arith.constant 0 : index
    %c0_4 = arith.constant 0 : index
    %c0_5 = arith.constant 0 : index
    %c0_6 = arith.constant 0 : index
    %5 = vector.load %arg4[%c0_3, %c0_4, %c0_5, %c0_6] : memref<1x2x8x8xf32, #tpu.memory_space<vmem>>, vector<1x2x8x8xf32>
    %6 = vector.shape_cast %5 : vector<1x2x8x8xf32> to vector<2x8x8xf32>
    %cst = arith.constant dense<0.000000e+00> : vector<8x8xf32>
    %7 = vector.multi_reduction <add>, %6, %cst [0] : vector<2x8x8xf32> to vector<8x8xf32>
    %8 = arith.mulf %6, %6 : vector<2x8x8xf32>
    %cst_7 = arith.constant dense<0.000000e+00> : vector<8x8xf32>
    %9 = vector.multi_reduction <add>, %8, %cst_7 [0] : vector<2x8x8xf32> to vector<8x8xf32>
    %c0_8 = arith.constant 0 : index
    %c0_9 = arith.constant 0 : index
    %10 = vector.load %arg6[%c0_8, %c0_9] : memref<8x8xf32, #tpu.memory_space<vmem>>, vector<8x8xf32>
    %cst_10 = arith.constant dense<0.000000e+00> : vector<8x8xf32>
    %11 = tpu.matmul %4, %7, %cst_10 {dimension_numbers = #tpu.dot_dimension_numbers<[0], [0], [1], [1], [0, 1, 1, 1], [], []>} : vector<8x8xf32>, vector<8x8xf32>, vector<8x8xf32> -> vector<8x8xf32>
    %12 = arith.addf %10, %11 : vector<8x8xf32>
    %c0_11 = arith.constant 0 : index
    %c0_12 = arith.constant 0 : index
    %13 = vector.load %arg6[%c0_11, %c0_12] : memref<8x8xf32, #tpu.memory_space<vmem>>, vector<8x8xf32>
    tpu.vector_store %arg6[%c0_11, %c0_12], %12 {strides = array<i32>} : memref<8x8xf32, #tpu.memory_space<vmem>>, vector<8x8xf32>,
    %c0_13 = arith.constant 0 : index
    %c0_14 = arith.constant 0 : index
    %14 = vector.load %arg7[%c0_13, %c0_14] : memref<1x8xf32, #tpu.memory_space<vmem>>, vector<1x8xf32>
    %15 = arith.mulf %4, %4 : vector<8x8xf32>
    %cst_15 = arith.constant dense<0.000000e+00> : vector<8xf32>
    %16 = vector.multi_reduction <add>, %15, %cst_15 [0] : vector<8x8xf32> to vector<8xf32>
    %17 = vector.shape_cast %16 : vector<8xf32> to vector<1x8xf32>
    %18 = arith.addf %14, %17 : vector<1x8xf32>
    %c0_16 = arith.constant 0 : index
    %c0_17 = arith.constant 0 : index
    %19 = vector.load %arg7[%c0_16, %c0_17] : memref<1x8xf32, #tpu.memory_space<vmem>>, vector<1x8xf32>
    tpu.vector_store %arg7[%c0_16, %c0_17], %18 {strides = array<i32>} : memref<1x8xf32, #tpu.memory_space<vmem>>, vector<1x8xf32>,
    %c0_18 = arith.constant 0 : index
    %c0_19 = arith.constant 0 : index
    %20 = vector.load %arg9[%c0_18, %c0_19] : memref<1x8xf32, #tpu.memory_space<vmem>>, vector<1x8xf32>
    %cst_20 = arith.constant dense<0.000000e+00> : vector<8xf32>
    %21 = vector.multi_reduction <add>, %4, %cst_20 [0] : vector<8x8xf32> to vector<8xf32>
    %22 = vector.shape_cast %21 : vector<8xf32> to vector<1x8xf32>
    %23 = arith.addf %20, %22 : vector<1x8xf32>
    %c0_21 = arith.constant 0 : index
    %c0_22 = arith.constant 0 : index
    %24 = vector.load %arg9[%c0_21, %c0_22] : memref<1x8xf32, #tpu.memory_space<vmem>>, vector<1x8xf32>
    tpu.vector_store %arg9[%c0_21, %c0_22], %23 {strides = array<i32>} : memref<1x8xf32, #tpu.memory_space<vmem>>, vector<1x8xf32>,
    %c0_23 = arith.constant 0 : index
    %c0_24 = arith.constant 0 : index
    %25 = vector.load %arg8[%c0_23, %c0_24] : memref<1x8xf32, #tpu.memory_space<vmem>>, vector<1x8xf32>
    %cst_25 = arith.constant dense<0.000000e+00> : vector<8xf32>
    %26 = vector.multi_reduction <add>, %9, %cst_25 [0] : vector<8x8xf32> to vector<8xf32>
    %27 = vector.shape_cast %26 : vector<8xf32> to vector<1x8xf32>
    %28 = arith.addf %25, %27 : vector<1x8xf32>
    %c0_26 = arith.constant 0 : index
    %c0_27 = arith.constant 0 : index
    %29 = vector.load %arg8[%c0_26, %c0_27] : memref<1x8xf32, #tpu.memory_space<vmem>>, vector<1x8xf32>
    tpu.vector_store %arg8[%c0_26, %c0_27], %28 {strides = array<i32>} : memref<1x8xf32, #tpu.memory_space<vmem>>, vector<1x8xf32>,
    %c0_i32_28 = arith.constant 0 : i32
    %30 = arith.cmpi eq, %arg1, %c0_i32_28 : i32
    %31 = arith.extui %30 : i1 to i32
    %c0_i32_29 = arith.constant 0 : i32
    %32 = arith.cmpi ne, %31, %c0_i32_29 : i32
    scf.if %32 {
      %c0_30 = arith.constant 0 : index
      %c0_31 = arith.constant 0 : index
      %33 = vector.load %arg6[%c0_30, %c0_31] : memref<8x8xf32, #tpu.memory_space<vmem>>, vector<8x8xf32>
      %c0_32 = arith.constant 0 : index
      %c0_33 = arith.constant 0 : index
      %34 = vector.load %arg7[%c0_32, %c0_33] : memref<1x8xf32, #tpu.memory_space<vmem>>, vector<1x8xf32>
      %cst_34 = arith.constant 2.000000e+00 : f32
      %35 = vector.broadcast %cst_34 : f32 to vector<1x8xf32>
      %36 = arith.mulf %34, %35 : vector<1x8xf32>
      %cst_35 = arith.constant 1.000000e-24 : f32
      %37 = vector.broadcast %cst_35 : f32 to vector<1x8xf32>
      %38 = arith.maximumf %36, %37 : vector<1x8xf32>
      %39 = math.rsqrt %38 : vector<1x8xf32>
      %c0_36 = arith.constant 0 : index
      %c0_37 = arith.constant 0 : index
      %40 = vector.load %arg8[%c0_36, %c0_37] : memref<1x8xf32, #tpu.memory_space<vmem>>, vector<1x8xf32>
      %cst_38 = arith.constant 1.000000e-24 : f32
      %41 = vector.broadcast %cst_38 : f32 to vector<1x8xf32>
      %42 = arith.maximumf %40, %41 : vector<1x8xf32>
      %43 = math.rsqrt %42 : vector<1x8xf32>
      %44 = tpu.iota {dimensions = array<i32: 0>} : vector<8x8xi32>
      %45 = tpu.iota {dimensions = array<i32: 1>} : vector<8x8xi32>
      %46 = arith.cmpi eq, %44, %45 : vector<8x8xi32>
      %cst_39 = arith.constant 0.000000e+00 : f32
      %47 = vector.shape_cast %39 : vector<1x8xf32> to vector<1x8xf32>
      %48 = vector.broadcast %47 : vector<1x8xf32> to vector<8x8xf32>
      %49 = vector.broadcast %cst_39 : f32 to vector<8x8xf32>
      %50 = arith.select %46, %48, %49 : vector<8x8xi1>, vector<8x8xf32>
      %cst_40 = arith.constant dense<0.000000e+00> : vector<8x8xf32>
      %51 = tpu.matmul %50, %33, %cst_40 {dimension_numbers = #tpu.dot_dimension_numbers<[1], [0], [0], [1], [0, 0, 1, 1], [], []>} : vector<8x8xf32>, vector<8x8xf32>, vector<8x8xf32> -> vector<8x8xf32>
      %52 = vector.broadcast %43 : vector<1x8xf32> to vector<8x8xf32>
      %53 = arith.mulf %51, %52 : vector<8x8xf32>
      %cst_41 = arith.constant dense<0xFF800000> : vector<8xf32>
      %54 = vector.multi_reduction <maximumf>, %53, %cst_41 [1] : vector<8x8xf32> to vector<8xf32>
      %55 = vector.shape_cast %54 : vector<8xf32> to vector<8x1xf32>
      %56 = vector.broadcast %55 : vector<8x1xf32> to vector<8x8xf32>
      %57 = arith.subf %53, %56 : vector<8x8xf32>
      %58 = math.exp %57 : vector<8x8xf32>
      %cst_42 = arith.constant dense<0.000000e+00> : vector<8xf32>
      %59 = vector.multi_reduction <add>, %58, %cst_42 [1] : vector<8x8xf32> to vector<8xf32>
      %60 = vector.shape_cast %59 : vector<8xf32> to vector<8x1xf32>
      %61 = math.log %60 : vector<8x1xf32>
      %62 = arith.addf %55, %61 : vector<8x1xf32>
      %cst_43 = arith.constant 0.000000e+00 : f32
      %63 = vector.broadcast %cst_43 : f32 to vector<8x8xf32>
      %64 = arith.select %46, %53, %63 : vector<8x8xi1>, vector<8x8xf32>
      %cst_44 = arith.constant dense<0.000000e+00> : vector<8xf32>
      %65 = vector.multi_reduction <add>, %64, %cst_44 [1] : vector<8x8xf32> to vector<8xf32>
      %66 = vector.shape_cast %65 : vector<8xf32> to vector<8x1xf32>
      %67 = arith.subf %62, %66 : vector<8x1xf32>
      %cst_45 = arith.constant dense<0.000000e+00> : vector<1xf32>
      %68 = vector.multi_reduction <add>, %67, %cst_45 [0] : vector<8x1xf32> to vector<1xf32>
      %69 = vector.shape_cast %68 : vector<1xf32> to vector<1x1xf32>
      %cst_46 = arith.constant 8.000000e+00 : f32
      %70 = vector.broadcast %cst_46 : f32 to vector<1x1xf32>
      %71 = arith.divf %69, %70 : vector<1x1xf32>
      %c0_47 = arith.constant 0 : index
      %c0_48 = arith.constant 0 : index
      %72 = vector.load %arg9[%c0_47, %c0_48] : memref<1x8xf32, #tpu.memory_space<vmem>>, vector<1x8xf32>
      %cst_49 = arith.constant dense<0.000000e+00> : vector<1xf32>
      %73 = vector.multi_reduction <add>, %72, %cst_49 [1] : vector<1x8xf32> to vector<1xf32>
      %74 = vector.shape_cast %73 : vector<1xf32> to vector<1x1xf32>
      %75 = vector.broadcast %74 : vector<1x1xf32> to vector<1x8xf32>
      %76 = arith.divf %72, %75 : vector<1x8xf32>
      %cst_50 = arith.constant 9.99999997E-7 : f32
      %77 = vector.broadcast %cst_50 : f32 to vector<1x8xf32>
      %78 = arith.addf %76, %77 : vector<1x8xf32>
      %79 = math.log %78 : vector<1x8xf32>
      %80 = arith.mulf %76, %79 : vector<1x8xf32>
      %cst_51 = arith.constant dense<0.000000e+00> : vector<1xf32>
      %81 = vector.multi_reduction <add>, %80, %cst_51 [1] : vector<1x8xf32> to vector<1xf32>
      %82 = vector.shape_cast %81 : vector<1xf32> to vector<1x1xf32>
      %cst_52 = arith.constant 2.07944155 : f32
      %83 = vector.broadcast %cst_52 : f32 to vector<1x1xf32>
      %84 = arith.addf %83, %82 : vector<1x1xf32>
      %c0_53 = arith.constant 0 : index
      %c0_54 = arith.constant 0 : index
      %85 = memref.load %arg2[%c0_53, %c0_54] : memref<1x1xf32, #tpu.memory_space<smem>>
      %86 = vector.broadcast %85 : f32 to vector<1x1xf32>
      %87 = arith.mulf %86, %84 : vector<1x1xf32>
      %88 = arith.addf %71, %87 : vector<1x1xf32>
      %89 = vector.shape_cast %88 : vector<1x1xf32> to vector<1x1x1xf32>
      %c0_55 = arith.constant 0 : index
      %c0_56 = arith.constant 0 : index
      %c0_57 = arith.constant 0 : index
      %90 = vector.load %arg5[%c0_55, %c0_56, %c0_57] : memref<1x1x1xf32, #tpu.memory_space<vmem>>, vector<1x1x1xf32>
      tpu.vector_store %arg5[%c0_55, %c0_56, %c0_57], %89 {strides = array<i32>} : memref<1x1x1xf32, #tpu.memory_space<vmem>>, vector<1x1x1xf32>,
    } else {
    }
    return
  }
  func.func @transform_0(%arg0: i32, %arg1: i32) -> (i32, i32) {
    %c0_i32 = arith.constant 0 : i32
    %c0_i32_0 = arith.constant 0 : i32
    %c0_i32_1 = arith.constant 0 : i32
    return %c0_i32, %c0_i32_0 : i32, i32
  }
  func.func @transform_1(%arg0: i32, %arg1: i32) -> (i32, i32, i32) {
    %c0_i32 = arith.constant 0 : i32
    %c0_i32_0 = arith.constant 0 : i32
    return %arg0, %arg1, %c0_i32 : i32, i32, i32
  }
  func.func @transform_2(%arg0: i32, %arg1: i32) -> (i32, i32, i32, i32) {
    %c0_i32 = arith.constant 0 : i32
    %c0_i32_0 = arith.constant 0 : i32
    %c0_i32_1 = arith.constant 0 : i32
    return %arg0, %c0_i32, %arg1, %c0_i32_0 : i32, i32, i32, i32
  }
  func.func @transform_3(%arg0: i32, %arg1: i32) -> (i32, i32, i32) {
    %c0_i32 = arith.constant 0 : i32
    %c0_i32_0 = arith.constant 0 : i32
    %c0_i32_1 = arith.constant 0 : i32
    return %arg0, %c0_i32, %c0_i32_0 : i32, i32, i32
  }
}

</mosaic_0001>

<llo_original>
// kernel: tpu_custom_call.1
$region0: #{tpu_custom_call.1}
  #allocation0 [shape = 'u32[]', space=smem, size = 0x4, offset = 0x4, fixed_abs, tag = 'smem constant byte address 0x4 - core index']
  #allocation1 [shape = 'u32[144,128]{1,0:T(1,128)}', space=vmem, size = 0x12000, scoped, tag = 'internal scratch']
  #allocation2 [shape = 'f32[8,8]{1,0:T(8,128)}', space=vmem, size = 0x1000, scoped, tag = 'scratch operand']
  #allocation3 [shape = 'f32[1,8]{1,0:T(1,128)}', space=vmem, size = 0x200, scoped, tag = 'scratch operand']
  #allocation4 [shape = 'f32[1,8]{1,0:T(1,128)}', space=vmem, size = 0x200, scoped, tag = 'scratch operand']
  #allocation5 [shape = 'f32[1,8]{1,0:T(1,128)}', space=vmem, size = 0x200, scoped, tag = 'scratch operand']
  #allocation6 [shape = 'f32[1,1]{1,0:T(1,128)S(6)}', space=smem, size = 0x200, scoped, tag = 'scoped memory for tpu_custom_call.1']
  %s0 = inlined_call_operand.<no memory space> [shape: f32[1,1], index: 0, kind: input, shape index: {}]
  %s1 = inlined_call_operand.hbm [shape: f32[2,8,8], index: 1, kind: input, shape index: {}]
  %s2 = inlined_call_operand.hbm [shape: f32[2,2,8,8], index: 2, kind: input, shape index: {}]
  %s3 = inlined_call_operand.vmem [shape: f32[2,1,1], index: 3, kind: output, shape index: {}]
  %s4 = sld [smem:[#allocation0]]
  $region61: #{tpu_custom_call.1} parent=0
    _
  %s6 = ssub.s32 1, %s4
  %s7 = scalar_select 0, %s6, %s4
  %8 = sst [smem:[#allocation6]] %s0
  $region1: #{tpu_custom_call.1} parent=0
    #allocation7 [shape = 'u8[8192]{0}', space=vmem, size = 0x2000, scoped, tag = 'input window, operand 1']
    #allocation8 [shape = 's32[2]{0}', space=sflag, size = 0x8, scoped, tag = 'scoped memory for tpu_custom_call.1']
    #allocation9 [shape = 'u8[16384]{0}', space=vmem, size = 0x4000, scoped, tag = 'input window, operand 2']
    #allocation10 [shape = 's32[2]{0}', space=sflag, size = 0x8, scoped, tag = 'scoped memory for tpu_custom_call.1']
    %9 = vsyncpa [#allocation8], 0
    %s10 = scalar_lea.sflag [#allocation8], 1
    %11 = vsyncpa %s10, 0
    %12 = vsyncpa [#allocation10], 0
    %s13 = scalar_lea.sflag [#allocation10], 1
    %14 = vsyncpa %s13, 0
    loop: start=0, step=1, limit=4
    $region2: #{tpu_custom_call.1} parent=1 // loop_pre_header
      _
    $region3: #{tpu_custom_call.1} parent=1 // loop_header
      %s16 = sphi 0, %s20
      %p17 = scmp.ge.s32.totalorder %s16, 4
      %s23 = sphi 0, %s35
      %s24 = sphi 0, %s31
      %s25 = sphi 0, %s23
      %s26 = sphi 0, %s24
      %s27 = sphi 0, %s25
      %s28 = sphi 0, %s26
      %s36 = sphi 0, %s36
      %s38 = sphi 0, %s36
      %s39 = sphi 0, %s38
      %s53 = sphi 0, %s39
      %s61 = sphi 0, %s63
      %s64 = sphi 0, %s61
      %s65 = sphi 0, %s64
      %s81 = sphi 0, %s65
      %s89 = sphi 0, %s91
      %s92 = sphi 0, %s89
      %s93 = sphi 0, %s92
      %s109 = sphi 0, %s93
      %s115 = sphi 0, %s117
      %s118 = sphi 0, %s115
      %s119 = sphi 0, %s118
      %s135 = sphi 0, %s119
    $region4: #{tpu_custom_call.1} parent=1 // loop_header_branch
      %19 = sbr.rel (%p17) target = $region8
    $region5: #{tpu_custom_call.1} parent=1 // loop_body
      %s21 = ssub.s32 %s16, 1
      %s22 = ssub.s32 %s16, 2
      %s29 = sadd.s32 1, %s24
      %p30 = scmp.ge.s32.totalorder %s29, 1
      %s31 = scalar_select %p30, 0, %s29
      %s32 = sadd.s32 1, %s23
      %s33 = scalar_select %p30, %s32, %s23
      %p34 = scmp.ge.s32.totalorder %s33, 2
      %s35 = scalar_select %p34, 0, %s33
      %s37 = sadd.s32 %s36, 1
      %p40 = scmp.eq.s32.totalorder %s16, 1
      %p41 = scmp.ne.s32.totalorder %s36, %s38
      %p42 = scmp.eq.s32.totalorder %s16, 0
      %p43 = por %p41, %p42
      %p44 = scmp.ne.s32.totalorder %s36, %s38
      %p45 = scmp.eq.s32.totalorder %s21, 1
      %p46 = por %p44, %p45
      %p47 = scmp.ne.s32.totalorder %s38, %s39
      %p48 = scmp.eq.s32.totalorder %s21, 0
      %p49 = por %p47, %p48
      %p50 = scmp.ne.s32.totalorder %s38, %s39
      %p51 = scmp.eq.s32.totalorder %s22, 1
      %p52 = por %p50, %p51
      %p54 = scmp.ne.s32.totalorder %s39, %s53
      %p55 = scmp.eq.s32.totalorder %s22, 0
      %p56 = por %p54, %p55
      %s57 = ssub.s32 %s23, %s35
      %s58 = ssub.s32 %s24, %s31
      %s59 = sor.u32 %s57, %s58
      %p60 = scmp.eq.s32.totalorder %s59, 0
      %s62 = sadd.s32 %s61, 1
      %s63 = scalar_select %p60, %s61, %s62
      %p66 = pneg %p60
      %p67 = scmp.eq.s32.totalorder %s16, 1
      %p68 = por %p66, %p67
      %p69 = scmp.ne.s32.totalorder %s61, %s64
      %p70 = scmp.eq.s32.totalorder %s16, 0
      %p71 = por %p69, %p70
      %p72 = scmp.ne.s32.totalorder %s61, %s64
      %p73 = scmp.eq.s32.totalorder %s21, 1
      %p74 = por %p72, %p73
      %p75 = scmp.ne.s32.totalorder %s64, %s65
      %p76 = scmp.eq.s32.totalorder %s21, 0
      %p77 = por %p75, %p76
      %p78 = scmp.ne.s32.totalorder %s64, %s65
      %p79 = scmp.eq.s32.totalorder %s22, 1
      %p80 = por %p78, %p79
      %p82 = scmp.ne.s32.totalorder %s65, %s81
      %p83 = scmp.eq.s32.totalorder %s22, 0
      %p84 = por %p82, %p83
      %s85 = ssub.s32 %s23, %s35
      %s86 = ssub.s32 %s24, %s31
      %s87 = sor.u32 %s85, %s86
      %p88 = scmp.eq.s32.totalorder %s87, 0
      %s90 = sadd.s32 %s89, 1
      %s91 = scalar_select %p88, %s89, %s90
      %p94 = pneg %p88
      %p95 = scmp.eq.s32.totalorder %s16, 1
      %p96 = por %p94, %p95
      %p97 = scmp.ne.s32.totalorder %s89, %s92
      %p98 = scmp.eq.s32.totalorder %s16, 0
      %p99 = por %p97, %p98
      %p100 = scmp.ne.s32.totalorder %s89, %s92
      %p101 = scmp.eq.s32.totalorder %s21, 1
      %p102 = por %p100, %p101
      %p103 = scmp.ne.s32.totalorder %s92, %s93
      %p104 = scmp.eq.s32.totalorder %s21, 0
      %p105 = por %p103, %p104
      %p106 = scmp.ne.s32.totalorder %s92, %s93
      %p107 = scmp.eq.s32.totalorder %s22, 1
      %p108 = por %p106, %p107
      %p110 = scmp.ne.s32.totalorder %s93, %s109
      %p111 = scmp.eq.s32.totalorder %s22, 0
      %p112 = por %p110, %p111
      %s113 = ssub.s32 %s23, %s35
      %p114 = scmp.eq.s32.totalorder %s113, 0
      %s116 = sadd.s32 %s115, 1
      %s117 = scalar_select %p114, %s115, %s116
      %p120 = pneg %p114
      %p121 = scmp.eq.s32.totalorder %s16, 1
      %p122 = por %p120, %p121
      %p123 = scmp.ne.s32.totalorder %s115, %s118
      %p124 = scmp.eq.s32.totalorder %s16, 0
      %p125 = por %p123, %p124
      %p126 = scmp.ne.s32.totalorder %s115, %s118
      %p127 = scmp.eq.s32.totalorder %s21, 1
      %p128 = por %p126, %p127
      %p129 = scmp.ne.s32.totalorder %s118, %s119
      %p130 = scmp.eq.s32.totalorder %s21, 0
      %p131 = por %p129, %p130
      %p132 = scmp.ne.s32.totalorder %s118, %s119
      %p133 = scmp.eq.s32.totalorder %s22, 1
      %p134 = por %p132, %p133
      %p136 = scmp.ne.s32.totalorder %s119, %s135
      %p137 = scmp.eq.s32.totalorder %s22, 0
      %p138 = por %p136, %p137
      %p139 = scmp.le.s32.totalorder 1, %s16
      %p140 = scmp.lt.s32.totalorder %s16, 3
      %p141 = pnand %p139, %p140
      %p142 = pneg %p141
      // Predicated region
      $region9: #{tpu_custom_call.1} parent=5 // pred_check
        _
      $region10: #{tpu_custom_call.1} parent=5 // pred_check_branch
        %144 = sbr.rel (%p141) target = $region12
      $region11: #{tpu_custom_call.1} parent=5 // pred_region
        %s145 = ssub.s32 %s16, 1
        // Predicated region
        $region13: #{tpu_custom_call.1} parent=11 // pred_check
          %p146 = pneg %p49
        $region14: #{tpu_custom_call.1} parent=11 // pred_check_branch
          %148 = sbr.rel (%p146) target = $region16
        $region15: #{tpu_custom_call.1} parent=11 // pred_region
          _
        $region16: #{tpu_custom_call.1} parent=11 // pred_fallthru
          _
      $region12: #{tpu_custom_call.1} parent=5 // pred_fallthru
        _
      %p149 = scmp.lt.s32.totalorder %s16, 2
      // Predicated region
      $region17: #{tpu_custom_call.1} parent=5 // pred_check
        %p150 = pneg %p149
      $region18: #{tpu_custom_call.1} parent=5 // pred_check_branch
        %152 = sbr.rel (%p150) target = $region20
      $region19: #{tpu_custom_call.1} parent=5 // pred_region
        // Predicated region
        $region21: #{tpu_custom_call.1} parent=19 // pred_check
          %p153 = pneg %p71
        $region22: #{tpu_custom_call.1} parent=19 // pred_check_branch
          %155 = sbr.rel (%p153) target = $region24
        $region23: #{tpu_custom_call.1} parent=19 // pred_region
          %s156 = sand.u32 %s61, 1
          %s157 = scalar_lea.sflag [#allocation8], %s156
          %s158 = sand.u32 %s61, 1
          %s159 = smul.addr %s158, 8
          %s160 = scalar_lea.vmem [#allocation7], %s159
          %s162 = ssub.s32 128, 128
          %163 = vsyncadd %s157, %s162
          %s164 = sadd.s32 %s24, %s23
          %s165 = smul.addr %s164, 128
          %s166 = scalar_lea.hbm %s1, %s165
          %s168 = sshll.u32 %s160, 4
          %s169 = int_to_ptr.vmem [resolvable:$true] %s168
          %171 = dma.hbm_to_vmem [thread:$0]  %s166, 128, %s169, %s157
        $region24: #{tpu_custom_call.1} parent=19 // pred_fallthru
          _
        // Predicated region
        $region25: #{tpu_custom_call.1} parent=19 // pred_check
          %p172 = pneg %p99
        $region26: #{tpu_custom_call.1} parent=19 // pred_check_branch
          %174 = sbr.rel (%p172) target = $region28
        $region27: #{tpu_custom_call.1} parent=19 // pred_region
          %s175 = sand.u32 %s89, 1
          %s176 = scalar_lea.sflag [#allocation10], %s175
          %s177 = sand.u32 %s89, 1
          %s178 = smul.addr %s177, 16
          %s179 = scalar_lea.vmem [#allocation9], %s178
          %s181 = ssub.s32 256, 256
          %182 = vsyncadd %s176, %s181
          %s183 = smul.addr %s23, 2
          %s184 = sadd.s32 %s24, %s183
          %s185 = smul.addr %s184, 128
          %s186 = scalar_lea.hbm %s2, %s185
          %s187 = sshll.u32 %s179, 4
          %s188 = int_to_ptr.vmem [resolvable:$true] %s187
          %193 = dma.hbm_to_vmem [thread:$0]  %s186, 256, %s188, %s176, 128, 128, 8
        $region28: #{tpu_custom_call.1} parent=19 // pred_fallthru
          _
      $region20: #{tpu_custom_call.1} parent=5 // pred_fallthru
        _
      %p194 = scmp.le.s32.totalorder 1, %s16
      %p195 = scmp.lt.s32.totalorder %s16, 3
      %p196 = pnand %p194, %p195
      %p197 = pneg %p196
      // Predicated region
      $region29: #{tpu_custom_call.1} parent=5 // pred_check
        _
      $region30: #{tpu_custom_call.1} parent=5 // pred_check_branch
        %199 = sbr.rel (%p196) target = $region32
      $region31: #{tpu_custom_call.1} parent=5 // pred_region
        %s200 = ssub.s32 %s16, 1
        %s201 = sand.u32 %s64, 1
        %s202 = scalar_lea.sflag [#allocation8], %s201
        %s203 = sand.u32 %s64, 1
        %s204 = smul.addr %s203, 8
        %s205 = scalar_lea.vmem [#allocation7], %s204
        // Predicated region
        $region33: #{tpu_custom_call.1} parent=31 // pred_check
          %p206 = pneg %p77
        $region34: #{tpu_custom_call.1} parent=31 // pred_check_branch
          %208 = sbr.rel (%p206) target = $region36
        $region35: #{tpu_custom_call.1} parent=31 // pred_region
          %209 = dma.done %s202, 128
        $region36: #{tpu_custom_call.1} parent=31 // pred_fallthru
          _
        %s210 = sand.u32 %s92, 1
        %s211 = scalar_lea.sflag [#allocation10], %s210
        %s212 = sand.u32 %s92, 1
        %s213 = smul.addr %s212, 16
        %s214 = scalar_lea.vmem [#allocation9], %s213
        // Predicated region
        $region37: #{tpu_custom_call.1} parent=31 // pred_check
          %p215 = pneg %p105
        $region38: #{tpu_custom_call.1} parent=31 // pred_check_branch
          %217 = sbr.rel (%p215) target = $region40
        $region39: #{tpu_custom_call.1} parent=31 // pred_region
          %218 = dma.done %s211, 256
        $region40: #{tpu_custom_call.1} parent=31 // pred_fallthru
          _
        %p219 = pneg %p49
        %p220 = pneg %p46
        %s221 = sand.u32 %s64, 1
        %s222 = scalar_lea.sflag [#allocation8], %s221
        %s223 = sand.u32 %s64, 1
        %s224 = smul.addr %s223, 8
        %s225 = scalar_lea.vmem [#allocation7], %s224
        %p226 = pneg %p77
        %p227 = pneg %p74
        %s228 = sand.u32 %s92, 1
        %s229 = scalar_lea.sflag [#allocation10], %s228
        %s230 = sand.u32 %s92, 1
        %s231 = smul.addr %s230, 16
        %s232 = scalar_lea.vmem [#allocation9], %s231
        %p233 = pneg %p105
        %p234 = pneg %p102
        %p235 = pneg %p131
        %p236 = pneg %p128
        %p237 = scmp.lt.s32.totalorder %s25, 1
        %s238 = scalar_select %p237, %s25, 1
        %s239 = scalar_lea.vmem %s3, %s238
        %p240 = scmp.lt.s32.totalorder %s25, 1
        %s241 = scalar_select %p240, %s25, 1
        %s242 = scalar_lea.vmem %s3, %s241
        %p243 = scmp.eq.s32.totalorder %s26, 0
        // Predicated region
        $region41: #{tpu_custom_call.1} parent=31 // pred_check
          %p244 = pneg %p243
        $region42: #{tpu_custom_call.1} parent=31 // pred_check_branch
          %246 = sbr.rel (%p244) target = $region44
        $region43: #{tpu_custom_call.1} parent=31 // pred_region
          %vm247 = vcmask 64512
          %248 = vst.msk [vmem:[#allocation2] sm:$0xff] %vm247, 0.0
          %vm249 = vcmask 57344
          %250 = vst.msk [vmem:[#allocation3] sm:$0x1] %vm249, 0.0
          %251 = vst.msk [vmem:[#allocation4] sm:$0x1] %vm249, 0.0
          %252 = vst.msk [vmem:[#allocation5] sm:$0x1] %vm249, 0.0
        $region44: #{tpu_custom_call.1} parent=31 // pred_fallthru
          _
        %v253 = vld [vmem:[%s205] sm:$0xff]
        %v254 = vld [vmem:[%s214] sm:$0xff]
        %v255 = vld [vmem:[%s214 + $0x8] sm:$0xff]
        %vm256 = vcmask 64512
        %v257 = vsel %vm256, %v254, 0.0
        %v258 = vsel %vm256, %v255, 0.0
        %v259 = vadd.f32 %v257, %v258
        %v260 = vmul.f32 %v254, %v254
        %v261 = vmul.f32 %v255, %v255
        %v262 = vsel %vm256, %v260, 0.0
        %v263 = vsel %vm256, %v261, 0.0
        %v264 = vadd.f32 %v262, %v263
        %v265 = vld [vmem:[#allocation2] sm:$0xff]
        %266 = vxpose.xlu0.b32.start [1/16] %v253, 128
        %267 = vxpose.xlu0.b32.cont [2/16] 0.0, 128
        %268 = vxpose.xlu0.b32.cont [3/16] 0.0, 128
        %269 = vxpose.xlu0.b32.cont [4/16] 0.0, 128
        %270 = vxpose.xlu0.b32.cont [5/16] 0.0, 128
        %271 = vxpose.xlu0.b32.cont [6/16] 0.0, 128
        %272 = vxpose.xlu0.b32.cont [7/16] 0.0, 128
        %273 = vxpose.xlu0.b32.cont [8/16] 0.0, 128
        %274 = vxpose.xlu0.b32.cont [9/16] 0.0, 128
        %275 = vxpose.xlu0.b32.cont [10/16] 0.0, 128
        %276 = vxpose.xlu0.b32.cont [11/16] 0.0, 128
        %277 = vxpose.xlu0.b32.cont [12/16] 0.0, 128
        %278 = vxpose.xlu0.b32.cont [13/16] 0.0, 128
        %279 = vxpose.xlu0.b32.cont [14/16] 0.0, 128
        %280 = vxpose.xlu0.b32.cont [15/16] 0.0, 128
        %281 = vxpose.xlu0.b32.end [16/16] 0.0, 128
        %v282 = vpop.trf.xlu0
        %v283 = vpop.trf.xlu0
        %v284 = vpop.trf.xlu0
        %v285 = vpop.trf.xlu0
        %v286 = vpop.trf.xlu0
        %v287 = vpop.trf.xlu0
        %v288 = vpop.trf.xlu0
        %v289 = vpop.trf.xlu0
        %v290 = vpop.trf.xlu0
        %v291 = vpop.trf.xlu0
        %v292 = vpop.trf.xlu0
        %v293 = vpop.trf.xlu0
        %v294 = vpop.trf.xlu0
        %v295 = vpop.trf.xlu0
        %v296 = vpop.trf.xlu0
        %v297 = vpop.trf.xlu0
        %v299 = vsel %vm256, %v282, 0
        %301 = vmatprep.subr.mxu0 0.0
        %302 = vmatpush1.msra.mxu0 %v259
        %303 = vmatprep.subr.mxu0 0.0
        %304 = vmatpush1.msra.mxu0 0.0
        %305 = vmatprep.subr.mxu0 0.0
        %306 = vmatpush1.msra.mxu0 0.0
        %307 = vmatprep.subr.mxu0 0.0
        %308 = vmatpush1.msra.mxu0 0.0
        %309 = vmatprep.subr.mxu0 0.0
        %310 = vmatpush1.msra.mxu0 0.0
        %311 = vmatprep.subr.mxu0 0.0
        %312 = vmatpush1.msra.mxu0 0.0
        %313 = vmatprep.subr.mxu0 0.0
        %314 = vmatpush1.msra.mxu0 0.0
        %315 = vmatprep.subr.mxu0 0.0
        %316 = vmatpush1.msra.mxu0 0.0
        %317 = vmatprep.subr.mxu0 0.0
        %318 = vmatpush1.msra.mxu0 0.0
        %319 = vmatprep.subr.mxu0 0.0
        %320 = vmatpush1.msra.mxu0 0.0
        %321 = vmatprep.subr.mxu0 0.0
        %322 = vmatpush1.msra.mxu0 0.0
        %323 = vmatprep.subr.mxu0 0.0
        %324 = vmatpush1.msra.mxu0 0.0
        %325 = vmatprep.subr.mxu0 0.0
        %326 = vmatpush1.msra.mxu0 0.0
        %327 = vmatprep.subr.mxu0 0.0
        %328 = vmatpush1.msra.mxu0 0.0
        %329 = vmatprep.subr.mxu0 0.0
        %330 = vmatpush1.msra.mxu0 0.0
        %331 = vmatprep.subr.mxu0 0.0
        %332 = vmatpush1.msra.mxu0 0.0
        %333 = vmatprep.subr.mxu0 0.0
        %334 = vmatpush1.msra.mxu0 0.0
        %335 = vmatprep.subr.mxu0 0.0
        %336 = vmatpush1.msra.mxu0 0.0
        %337 = vmatprep.subr.mxu0 0.0
        %338 = vmatpush1.msra.mxu0 0.0
        %339 = vmatprep.subr.mxu0 0.0
        %340 = vmatpush1.msra.mxu0 0.0
        %341 = vmatprep.subr.mxu0 0.0
        %342 = vmatpush1.msra.mxu0 0.0
        %343 = vmatprep.subr.mxu0 0.0
        %344 = vmatpush1.msra.mxu0 0.0
        %345 = vmatprep.subr.mxu0 0.0
        %346 = vmatpush1.msra.mxu0 0.0
        %347 = vmatprep.subr.mxu0 0.0
        %348 = vmatpush1.msra.mxu0 0.0
        %349 = vmatprep.subr.mxu0 0.0
        %350 = vmatpush1.msra.mxu0 0.0
        %351 = vmatprep.subr.mxu0 0.0
        %352 = vmatpush1.msra.mxu0 0.0
        %353 = vmatprep.subr.mxu0 0.0
        %354 = vmatpush1.msra.mxu0 0.0
        %355 = vmatprep.subr.mxu0 0.0
        %356 = vmatpush1.msra.mxu0 0.0
        %357 = vmatprep.subr.mxu0 0.0
        %358 = vmatpush1.msra.mxu0 0.0
        %359 = vmatprep.subr.mxu0 0.0
        %360 = vmatpush1.msra.mxu0 0.0
        %361 = vmatprep.subr.mxu0 0.0
        %362 = vmatpush1.msra.mxu0 0.0
        %363 = vmatprep.subr.mxu0 0.0
        %364 = vmatpush1.msra.mxu0 0.0
        %365 = vmatprep.mubr.f32.mxu0 0.0
        %366 = vmatmul.mubr.f32.gmra.mrb[0].mxu0 %v299
        %v367 = vpop.f32.mrb[0].mxu0
        %v368 = vadd.f32 0.0, %v367
        %v369 = vpop.f32.mrb[0].mxu0
        %370 = vdwg.mxu0
        %v371 = vadd.f32 %v265, %v368
        %372 = vst.msk [vmem:[#allocation2] sm:$0xff] %vm256, %v371
        %v373 = vld [vmem:[#allocation3] sm:$0x1]
        %v374 = vmul.f32 %v253, %v253
        %v375 = vsel %vm256, %v374, 0.0
        %v376 = vrot.slane %v375, 4
        %v377 = vadd.f32 %v375, %v376
        %v378 = vrot.slane %v377, 2
        %v379 = vadd.f32 %v377, %v378
        %v380 = vrot.slane %v379, 1
        %v381 = vadd.f32 %v379, %v380
        %v382 = vadd.f32 %v373, %v381
        %vm383 = vcmask 57344
        %384 = vst.msk [vmem:[#allocation3] sm:$0x1] %vm383, %v382
        %v385 = vld [vmem:[#allocation5] sm:$0x1]
        %v386 = vsel %vm256, %v253, 0.0
        %v387 = vrot.slane %v386, 4
        %v388 = vadd.f32 %v386, %v387
        %v389 = vrot.slane %v388, 2
        %v390 = vadd.f32 %v388, %v389
        %v391 = vrot.slane %v390, 1
        %v392 = vadd.f32 %v390, %v391
        %v393 = vadd.f32 %v385, %v392
        %394 = vst.msk [vmem:[#allocation5] sm:$0x1] %vm383, %v393
        %v395 = vld [vmem:[#allocation4] sm:$0x1]
        %v396 = vsel %vm256, %v264, 0.0
        %v397 = vrot.slane %v396, 4
        %v398 = vadd.f32 %v396, %v397
        %v399 = vrot.slane %v398, 2
        %v400 = vadd.f32 %v398, %v399
        %v401 = vrot.slane %v400, 1
        %v402 = vadd.f32 %v400, %v401
        %v403 = vadd.f32 %v395, %v402
        %404 = vst.msk [vmem:[#allocation4] sm:$0x1] %vm383, %v403
        // Predicated region
        $region45: #{tpu_custom_call.1} parent=31 // pred_check
          %p405 = pneg %p243
        $region46: #{tpu_custom_call.1} parent=31 // pred_check_branch
          %407 = sbr.rel (%p405) target = $region48
        $region47: #{tpu_custom_call.1} parent=31 // pred_region
          %v408 = vld [vmem:[#allocation2] sm:$0xff]
          %v409 = vld [vmem:[#allocation3] sm:$0x1]
          %v410 = vmul.f32 %v409, 2.0
          %v411 = vmax.f32 %v410, 1e-24
          %v412 = vrsqrt.pop %v411
          %v413 = vld [vmem:[#allocation4] sm:$0x1]
          %v414 = vmax.f32 %v413, 1e-24
          %v415 = vrsqrt.pop %v414
          %v416 = vlaneseq
          %v417 = vshrl.u32 %v416, 7
          %v418 = vlaneseq
          %v419 = vand.u32 %v418, 127
          %vm420 = vcmp.eq.s32.totalorder %v417, %v419
          %v422 = vlaneseq
          %v423 = vshrl.u32 %v422, 7
          %v424 = vsub.s32 0, %v423
          %v425 = vrot.slane %v412, %v424
          %v427 = vsel %vm420, %v425, 0.0
          %v429 = vsel %vm256, %v427, 0
          %431 = vmatprep.subr.mxu0 0.0
          %432 = vmatpush1.msra.mxu0 %v408
          %433 = vmatprep.subr.mxu0 0.0
          %434 = vmatpush1.msra.mxu0 0.0
          %435 = vmatprep.subr.mxu0 0.0
          %436 = vmatpush1.msra.mxu0 0.0
          %437 = vmatprep.subr.mxu0 0.0
          %438 = vmatpush1.msra.mxu0 0.0
          %439 = vmatprep.subr.mxu0 0.0
          %440 = vmatpush1.msra.mxu0 0.0
          %441 = vmatprep.subr.mxu0 0.0
          %442 = vmatpush1.msra.mxu0 0.0
          %443 = vmatprep.subr.mxu0 0.0
          %444 = vmatpush1.msra.mxu0 0.0
          %445 = vmatprep.subr.mxu0 0.0
          %446 = vmatpush1.msra.mxu0 0.0
          %447 = vmatprep.subr.mxu0 0.0
          %448 = vmatpush1.msra.mxu0 0.0
          %449 = vmatprep.subr.mxu0 0.0
          %450 = vmatpush1.msra.mxu0 0.0
          %451 = vmatprep.subr.mxu0 0.0
          %452 = vmatpush1.msra.mxu0 0.0
          %453 = vmatprep.subr.mxu0 0.0
          %454 = vmatpush1.msra.mxu0 0.0
          %455 = vmatprep.subr.mxu0 0.0
          %456 = vmatpush1.msra.mxu0 0.0
          %457 = vmatprep.subr.mxu0 0.0
          %458 = vmatpush1.msra.mxu0 0.0
          %459 = vmatprep.subr.mxu0 0.0
          %460 = vmatpush1.msra.mxu0 0.0
          %461 = vmatprep.subr.mxu0 0.0
          %462 = vmatpush1.msra.mxu0 0.0
          %463 = vmatprep.subr.mxu0 0.0
          %464 = vmatpush1.msra.mxu0 0.0
          %465 = vmatprep.subr.mxu0 0.0
          %466 = vmatpush1.msra.mxu0 0.0
          %467 = vmatprep.subr.mxu0 0.0
          %468 = vmatpush1.msra.mxu0 0.0
          %469 = vmatprep.subr.mxu0 0.0
          %470 = vmatpush1.msra.mxu0 0.0
          %471 = vmatprep.subr.mxu0 0.0
          %472 = vmatpush1.msra.mxu0 0.0
          %473 = vmatprep.subr.mxu0 0.0
          %474 = vmatpush1.msra.mxu0 0.0
          %475 = vmatprep.subr.mxu0 0.0
          %476 = vmatpush1.msra.mxu0 0.0
          %477 = vmatprep.subr.mxu0 0.0
          %478 = vmatpush1.msra.mxu0 0.0
          %479 = vmatprep.subr.mxu0 0.0
          %480 = vmatpush1.msra.mxu0 0.0
          %481 = vmatprep.subr.mxu0 0.0
          %482 = vmatpush1.msra.mxu0 0.0
          %483 = vmatprep.subr.mxu0 0.0
          %484 = vmatpush1.msra.mxu0 0.0
          %485 = vmatprep.subr.mxu0 0.0
          %486 = vmatpush1.msra.mxu0 0.0
          %487 = vmatprep.subr.mxu0 0.0
          %488 = vmatpush1.msra.mxu0 0.0
          %489 = vmatprep.subr.mxu0 0.0
          %490 = vmatpush1.msra.mxu0 0.0
          %491 = vmatprep.subr.mxu0 0.0
          %492 = vmatpush1.msra.mxu0 0.0
          %493 = vmatprep.subr.mxu0 0.0
          %494 = vmatpush1.msra.mxu0 0.0
          %495 = vmatprep.mubr.f32.mxu0 0.0
          %496 = vmatmul.mubr.f32.gmra.mrb[0].mxu0 %v429
          %v497 = vpop.f32.mrb[0].mxu0
          %v498 = vadd.f32 0.0, %v497
          %v499 = vpop.f32.mrb[0].mxu0
          %500 = vdwg.mxu0
          %v502 = vlaneseq
          %v503 = vshrl.u32 %v502, 7
          %v504 = vsub.s32 0, %v503
          %v505 = vrot.slane %v415, %v504
          %v507 = vmul.f32 %v498, %v505
          %v508 = vsel %vm256, %v507, -inf
          %509 = vmax.xlane.f32.xlu0 %v508
          %v510 = vpop.xlane.xlu0 %509
          %v511 = vsub.f32 %v507, %v510
          %v512 = vmul.f32 %v511, 1.442695
          %v513 = vpow.pop %v512
          %v514 = vsel %vm256, %v513, 0.0
          %515 = vadd.xlane.f32.xlu0 %v514
          %v516 = vpop.xlane.xlu0 %515
          %v517 = vlog2.pop %v516
          %v518 = vmul.f32 %v517, 0.6931472
          %v519 = vadd.f32 %v510, %v518
          %v520 = vsel %vm420, %v507, 0.0
          %v521 = vsel %vm256, %v520, 0.0
          %522 = vadd.xlane.f32.xlu0 %v521
          %v523 = vpop.xlane.xlu0 %522
          %v524 = vsub.f32 %v519, %v523
          %v525 = vrot.slane %v524, 4
          %v526 = vadd.f32 %v524, %v525
          %v527 = vrot.slane %v526, 2
          %v528 = vadd.f32 %v526, %v527
          %v529 = vrot.slane %v528, 1
          %v530 = vadd.f32 %v528, %v529
          %v531 = vrcp.pop 8.0
          %v532 = vmul.f32 %v530, %v531
          %v533 = vld [vmem:[#allocation5] sm:$0x1]
          %v534 = vsel %vm383, %v533, 0.0
          %535 = vadd.xlane.f32.xlu0 %v534
          %v536 = vpop.xlane.xlu0 %535
          %v537 = vrcp.pop %v536
          %v538 = vmul.f32 %v533, %v537
          %v539 = vadd.f32 %v538, 1e-06
          %v540 = vlog2.pop %v539
          %v541 = vmul.f32 %v540, 0.6931472
          %v542 = vmul.f32 %v538, %v541
          %v543 = vsel %vm383, %v542, 0.0
          %544 = vadd.xlane.f32.xlu0 %v543
          %v545 = vpop.xlane.xlu0 %544
          %v546 = vadd.f32 %v545, 2.0794415
          %s547 = sld [smem:[#allocation6]]
          %v548 = vstv %s547
          %v549 = vmul.f32 %v548, %v546
          %v550 = vadd.f32 %v532, %v549
          %vm551 = vcmask 0
          %552 = vst.msk [vmem:[%s242] sm:$0x1] %vm551, %v550
        $region48: #{tpu_custom_call.1} parent=31 // pred_fallthru
          _
        %p553 = scmp.lt.s32.totalorder %s25, 1
        %s554 = scalar_select %p553, %s25, 1
        %s555 = scalar_lea.vmem %s3, %s554
        // Predicated region
        $region49: #{tpu_custom_call.1} parent=31 // pred_check
          %p556 = pneg %p128
        $region50: #{tpu_custom_call.1} parent=31 // pred_check_branch
          %558 = sbr.rel (%p556) target = $region52
        $region51: #{tpu_custom_call.1} parent=31 // pred_region
          _
        $region52: #{tpu_custom_call.1} parent=31 // pred_fallthru
          _
      $region32: #{tpu_custom_call.1} parent=5 // pred_fallthru
        _
      %p559 = scmp.le.s32.totalorder 2, %s16
      // Predicated region
      $region53: #{tpu_custom_call.1} parent=5 // pred_check
        %p560 = pneg %p559
      $region54: #{tpu_custom_call.1} parent=5 // pred_check_branch
        %562 = sbr.rel (%p560) target = $region56
      $region55: #{tpu_custom_call.1} parent=5 // pred_region
        %s563 = ssub.s32 %s16, 2
        // Predicated region
        $region57: #{tpu_custom_call.1} parent=55 // pred_check
          %p564 = pneg %p134
        $region58: #{tpu_custom_call.1} parent=55 // pred_check_branch
          %566 = sbr.rel (%p564) target = $region60
        $region59: #{tpu_custom_call.1} parent=55 // pred_region
          %p567 = scmp.lt.s32.totalorder %s27, 1
          %s568 = scalar_select %p567, %s27, 1
          %s569 = scalar_lea.vmem %s3, %s568
        $region60: #{tpu_custom_call.1} parent=55 // pred_fallthru
          _
      $region56: #{tpu_custom_call.1} parent=5 // pred_fallthru
        _
    $region6: #{tpu_custom_call.1} parent=1 // loop_footer
      %s20 = sadd.s32 1, %s16
    $region7: #{tpu_custom_call.1} parent=1 // loop_footer_branch
      %15 = sbr.rel target = $region3
    $region8: #{tpu_custom_call.1} parent=1 // loop_exit
      _
    %570 = vsyncpa [#allocation8], 1
    %s571 = scalar_lea.sflag [#allocation8], 1
    %572 = vsyncpa %s571, 1
    %573 = vsyncpa [#allocation10], 1
    %s574 = scalar_lea.sflag [#allocation10], 1
    %575 = vsyncpa %s574, 1

</llo_original>
